<compile_context>
chip_gen: v7x
topology: tpu7x:2x2x1
jax: 0.10.0
libtpu: 0.0.40
codegen_flags: <defaults>
</compile_context>

<pallas_src>
import jax
import jax.numpy as jnp
from jax.experimental import pallas as pl
from jax.experimental.pallas import tpu as pltpu

KERNEL_SIZES = (2, 3, 4, 5)
KERNEL_NUMS = (10, 10, 10, 10)
KMAX = max(KERNEL_SIZES)
KMIN = min(KERNEL_SIZES)
N_PAD = 128     # conv output channels (sum(KERNEL_NUMS)=40) padded to lane width
C_PAD = 128     # classifier logits padded to lane width


def _round_up(x, m):
    return (x + m - 1) // m * m


def cnn_text_kernel(x_ref, w_ref, bconv_ref, mask_ref, wfc_ref, bfc_ref,
                    out_ref):
    # x_ref    : (TILE_B, L_out_pad, K_pad) bf16  im2col'd embeddings
    # w_ref    : (K_pad, N_PAD)             bf16  fused, zero-padded conv weights
    # bconv_ref: (1, N_PAD)                 f32   fused conv bias (zero in padding)
    # mask_ref : (L_out_pad, N_PAD)         f32   1.0 where (position, channel) valid
    # wfc_ref  : (N_PAD, C_PAD)             bf16  FC weight (transposed, padded)
    # bfc_ref  : (1, C_PAD)                 f32
    # out_ref  : (TILE_B, C_PAD)            f32
    tile_b, l_out, k_pad = x_ref.shape
    n_pad = w_ref.shape[1]
    m = tile_b * l_out

    # Single im2col conv matmul: (M, K_pad) @ (K_pad, N_PAD), f32 accumulation.
    xs = x_ref[...].reshape(m, k_pad)          # tile-aligned reshape (8/128 mults)
    acc = jnp.dot(xs, w_ref[...], preferred_element_type=jnp.float32)

    acc = jnp.maximum(acc + bconv_ref[...], 0.0)           # bias + ReLU (f32)
    acc = acc.reshape(tile_b, l_out, n_pad) * mask_ref[...][None]
    feat = jnp.max(acc, axis=1)                            # (TILE_B, N_PAD)

    # TODO(synk): nn.Dropout(0.5) is identity at inference; no stochastic mask.
    logits = jnp.dot(feat.astype(wfc_ref.dtype), wfc_ref[...],
                     preferred_element_type=jnp.float32) + bfc_ref[...]
    out_ref[...] = logits.astype(out_ref.dtype)


def _pick_tile_b(B, max_tile_b, per_row_bytes, budget_bytes=12 << 20):
    """TILE_B: multiple of 8 dividing round_up(B,8), under the VMEM budget,
    preferring >=2 grid steps (keeps both v7x TensorCores busy)."""
    B8 = _round_up(B, 8)
    cap = max(8, min(max_tile_b, budget_bytes // max(per_row_bytes, 1)))
    cap = max(8, (cap // 8) * 8)
    cap = min(cap, B8)
    cands = [t for t in range(8, cap + 1, 8) if B8 % t == 0]   # 8 always divides B8
    multi = [t for t in cands if B8 // t >= 2]
    tile = max(multi) if multi else max(cands)
    return tile, B8


def cnn_text_forward(words, embed_table, conv_ws, conv_bs, fc_w, fc_b,
                     max_tile_b=128):
    B, L = words.shape
    D = embed_table.shape[1]
    C = fc_b.shape[0]
    N_total = sum(KERNEL_NUMS)

    if L < KMAX:
        # torch Conv1d errors when the kernel is longer than the input.
        raise ValueError(f"sequence length {L} < largest kernel size {KMAX}")

    L_out = L - KMIN + 1                       # positions of the smallest kernel
    L_out_pad = _round_up(L_out, 8)            # sublane-aligned position count
    K_pad = _round_up(KMAX * D, 256)           # fill 256-deep MXU (v6e/v7x); 128 | 256

    per_row_bytes = L_out_pad * (2 * K_pad * 2        # double-buffered bf16 x row
                                 + 3 * N_PAD * 4)     # f32 conv temporaries
    TILE_B, B_pad = _pick_tile_b(B, max_tile_b, per_row_bytes)

    # Embedding gather builds the im2col LHS directly: index [t, j] -> words[b, t+j].
    # Out-of-range (t+j) only ever reaches taps whose fused weight (or position
    # mask) is zero, so clipping the index is exact.
    # TODO(synk): fuse the gather into the kernel (HBM-resident table + in-kernel
    # DMA row gathers) to remove the activation write+read round-trip entirely.
    pos = jnp.clip(jnp.arange(L_out_pad)[:, None] + jnp.arange(KMAX)[None, :],
                   0, L - 1)                                   # (L_out_pad, KMAX)
    word_ids = words[:, pos]                                   # (B, L_out_pad, KMAX)
    x = jnp.take(embed_table, word_ids, axis=0)                # (B, L_out_pad, KMAX, D)
    x = x.reshape(B, L_out_pad, KMAX * D).astype(jnp.bfloat16)
    x = jnp.pad(x, ((0, B_pad - B), (0, 0), (0, K_pad - KMAX * D)))

    # Fuse the four conv branches: stack filters along the output dim (lane
    # padded to N_PAD), lay taps along the contraction dim (row j*D + d), and
    # build the per-(position, channel) validity mask.
    w_fused = jnp.zeros((K_pad, N_PAD), jnp.float32)
    bconv = jnp.zeros((1, N_PAD), jnp.float32)
    mask = jnp.zeros((L_out_pad, N_PAD), jnp.float32)
    off = 0
    for (k, n), w, b in zip(zip(KERNEL_SIZES, KERNEL_NUMS), conv_ws, conv_bs):
        # w stored as (k, D, n): w[j, d, c] == torch Conv1d.weight[c, d, j]
        w_fused = w_fused.at[:k * D, off:off + n].set(
            w.astype(jnp.float32).reshape(k * D, n))
        bconv = bconv.at[0, off:off + n].set(b.astype(jnp.float32))
        mask = mask.at[:L - k + 1, off:off + n].set(1.0)
        off += n
    w_fused = w_fused.astype(jnp.bfloat16)

    wfc = jnp.zeros((N_PAD, C_PAD), jnp.float32)
    wfc = wfc.at[:N_total, :C].set(fc_w.T.astype(jnp.float32)).astype(jnp.bfloat16)
    bfc = jnp.zeros((1, C_PAD), jnp.float32).at[0, :C].set(fc_b.astype(jnp.float32))

    out = pl.pallas_call(
        cnn_text_kernel,
        out_shape=jax.ShapeDtypeStruct((B_pad, C_PAD), jnp.float32),
        grid_spec=pltpu.PrefetchScalarGridSpec(
            num_scalar_prefetch=0,
            grid=(B_pad // TILE_B,),
            in_specs=[
                pl.BlockSpec((TILE_B, L_out_pad, K_pad), lambda i: (i, 0, 0)),
                pl.BlockSpec((K_pad, N_PAD), lambda i: (0, 0)),
                pl.BlockSpec((1, N_PAD), lambda i: (0, 0)),
                pl.BlockSpec((L_out_pad, N_PAD), lambda i: (0, 0)),
                pl.BlockSpec((N_PAD, C_PAD), lambda i: (0, 0)),
                pl.BlockSpec((1, C_PAD), lambda i: (0, 0)),
            ],
            out_specs=pl.BlockSpec((TILE_B, C_PAD), lambda i: (i, 0)),
        ),
        compiler_params=pltpu.CompilerParams(
            dimension_semantics=("parallel",),
            vmem_limit_bytes=32 * 1024 * 1024),
    )(x, w_fused, bconv, mask, wfc, bfc)
    return out[:B, :C]


if __name__ == "__main__":
    key = jax.random.PRNGKey(0)
    vocab, D = 50, 32
    B, L = 2, 8
    num_classes = 5

    keys = jax.random.split(key, 12)
    embed_table = jax.random.normal(keys[0], (vocab, D), jnp.float32) * 0.1
    conv_ws, conv_bs = [], []
    for idx, (k, n) in enumerate(zip(KERNEL_SIZES, KERNEL_NUMS)):
        # stored as (k, D, n): w[j, d, c] == torch Conv1d.weight[c, d, j]
        conv_ws.append(jax.random.normal(keys[1 + idx], (k, D, n), jnp.float32) * 0.1)
        conv_bs.append(jax.random.normal(keys[5 + idx], (n,), jnp.float32) * 0.1)
    fc_w = jax.random.normal(keys[9], (num_classes, sum(KERNEL_NUMS)), jnp.float32) * 0.1
    fc_b = jax.random.normal(keys[10], (num_classes,), jnp.float32) * 0.1
    words = jax.random.randint(keys[11], (B, L), 0, vocab)

    out = cnn_text_forward(words, embed_table, conv_ws, conv_bs, fc_w, fc_b)
    out = jax.block_until_ready(out)

    # Pure-JAX f32 reference for correctness.
    x = jnp.take(embed_table, words, axis=0)
    feats = []
    for (k, n), w, b in zip(zip(KERNEL_SIZES, KERNEL_NUMS), conv_ws, conv_bs):
        L_out = L - k + 1
        acc = jnp.zeros((B, L_out, n), jnp.float32)
        for j in range(k):
            acc = acc + jnp.einsum('bld,dn->bln', x[:, j:j + L_out, :], w[j])
        acc = jax.nn.relu(acc + b[None, None, :])
        feats.append(jnp.max(acc, axis=1))
    ref = jnp.concatenate(feats, axis=-1) @ fc_w.T + fc_b

    assert out.shape == (B, num_classes)
    # bf16 matmul inputs with f32 accumulation -> loosened tolerance.
    assert jnp.allclose(out, ref, atol=2e-2, rtol=2e-2), (out, ref)
    print("KERNEL_OK")
</pallas_src>

<mosaic_0001>
module attributes {stable_mosaic.version = 11 : i64} {
  func.func @cnn_text_kernel(%arg0: i32, %arg1: memref<8x8x256xbf16, #tpu.memory_space<vmem>>, %arg2: memref<256x128xbf16, #tpu.memory_space<vmem>>, %arg3: memref<1x128xf32, #tpu.memory_space<vmem>>, %arg4: memref<8x128xf32, #tpu.memory_space<vmem>>, %arg5: memref<128x128xbf16, #tpu.memory_space<vmem>>, %arg6: memref<1x128xf32, #tpu.memory_space<vmem>>, %arg7: memref<8x128xf32, #tpu.memory_space<vmem>>) attributes {dimension_semantics = [#tpu.dimension_semantics<parallel>], iteration_bounds = array<i64: 1>, scalar_prefetch = 0 : i64, scratch_operands = 0 : i64, tpu.core_type = #tpu.core_type<tc>, window_params = [{transform_indices = @transform_0, window_bounds = array<i64: 8, 8, 256>}, {pipeline_mode = #tpu.pipeline_mode<synchronous>, transform_indices = @transform_1, window_bounds = array<i64: 256, 128>}, {pipeline_mode = #tpu.pipeline_mode<synchronous>, transform_indices = @transform_2, window_bounds = array<i64: 1, 128>}, {pipeline_mode = #tpu.pipeline_mode<synchronous>, transform_indices = @transform_3, window_bounds = array<i64: 8, 128>}, {pipeline_mode = #tpu.pipeline_mode<synchronous>, transform_indices = @transform_4, window_bounds = array<i64: 128, 128>}, {pipeline_mode = #tpu.pipeline_mode<synchronous>, transform_indices = @transform_5, window_bounds = array<i64: 1, 128>}, {transform_indices = @transform_6, window_bounds = array<i64: 8, 128>}]} {
    %c0 = arith.constant 0 : index
    %c0_0 = arith.constant 0 : index
    %c0_1 = arith.constant 0 : index
    %0 = vector.load %arg1[%c0, %c0_0, %c0_1] : memref<8x8x256xbf16, #tpu.memory_space<vmem>>, vector<8x8x256xbf16>
    %1 = vector.shape_cast %0 : vector<8x8x256xbf16> to vector<64x256xbf16>
    %c0_2 = arith.constant 0 : index
    %c0_3 = arith.constant 0 : index
    %2 = vector.load %arg2[%c0_2, %c0_3] : memref<256x128xbf16, #tpu.memory_space<vmem>>, vector<256x128xbf16>
    %cst = arith.constant dense<0.000000e+00> : vector<64x128xf32>
    %3 = tpu.matmul %1, %2, %cst {dimension_numbers = #tpu.dot_dimension_numbers<[1], [0], [0], [1], [0, 0, 1, 1], [], []>} : vector<64x256xbf16>, vector<256x128xbf16>, vector<64x128xf32> -> vector<64x128xf32>
    %c0_4 = arith.constant 0 : index
    %c0_5 = arith.constant 0 : index
    %4 = vector.load %arg3[%c0_4, %c0_5] : memref<1x128xf32, #tpu.memory_space<vmem>>, vector<1x128xf32>
    %5 = vector.broadcast %4 : vector<1x128xf32> to vector<64x128xf32>
    %6 = arith.addf %3, %5 : vector<64x128xf32>
    %cst_6 = arith.constant 0.000000e+00 : f32
    %7 = vector.broadcast %cst_6 : f32 to vector<64x128xf32>
    %8 = arith.maximumf %6, %7 : vector<64x128xf32>
    %9 = vector.shape_cast %8 : vector<64x128xf32> to vector<8x8x128xf32>
    %c0_7 = arith.constant 0 : index
    %c0_8 = arith.constant 0 : index
    %10 = vector.load %arg4[%c0_7, %c0_8] : memref<8x128xf32, #tpu.memory_space<vmem>>, vector<8x128xf32>
    %11 = vector.shape_cast %10 : vector<8x128xf32> to vector<1x8x128xf32>
    %12 = vector.broadcast %11 : vector<1x8x128xf32> to vector<8x8x128xf32>
    %13 = arith.mulf %9, %12 : vector<8x8x128xf32>
    %cst_9 = arith.constant dense<0xFF800000> : vector<8x128xf32>
    %14 = vector.multi_reduction <maximumf>, %13, %cst_9 [1] : vector<8x8x128xf32> to vector<8x128xf32>
    %15 = arith.truncf %14 : vector<8x128xf32> to vector<8x128xbf16>
    %c0_10 = arith.constant 0 : index
    %c0_11 = arith.constant 0 : index
    %16 = vector.load %arg5[%c0_10, %c0_11] : memref<128x128xbf16, #tpu.memory_space<vmem>>, vector<128x128xbf16>
    %cst_12 = arith.constant dense<0.000000e+00> : vector<8x128xf32>
    %17 = tpu.matmul %15, %16, %cst_12 {dimension_numbers = #tpu.dot_dimension_numbers<[1], [0], [0], [1], [0, 0, 1, 1], [], []>} : vector<8x128xbf16>, vector<128x128xbf16>, vector<8x128xf32> -> vector<8x128xf32>
    %c0_13 = arith.constant 0 : index
    %c0_14 = arith.constant 0 : index
    %18 = vector.load %arg6[%c0_13, %c0_14] : memref<1x128xf32, #tpu.memory_space<vmem>>, vector<1x128xf32>
    %19 = vector.broadcast %18 : vector<1x128xf32> to vector<8x128xf32>
    %20 = arith.addf %17, %19 : vector<8x128xf32>
    %c0_15 = arith.constant 0 : index
    %c0_16 = arith.constant 0 : index
    %21 = vector.load %arg7[%c0_15, %c0_16] : memref<8x128xf32, #tpu.memory_space<vmem>>, vector<8x128xf32>
    tpu.vector_store %arg7[%c0_15, %c0_16], %20 {strides = array<i32>} : memref<8x128xf32, #tpu.memory_space<vmem>>, vector<8x128xf32>,
    return
  }
  func.func @transform_0(%arg0: i32) -> (i32, i32, i32) {
    %c0_i32 = arith.constant 0 : i32
    %c0_i32_0 = arith.constant 0 : i32
    %c0_i32_1 = arith.constant 0 : i32
    return %arg0, %c0_i32, %c0_i32_0 : i32, i32, i32
  }
  func.func @transform_1(%arg0: i32) -> (i32, i32) {
    %c0_i32 = arith.constant 0 : i32
    %c0_i32_0 = arith.constant 0 : i32
    %c0_i32_1 = arith.constant 0 : i32
    return %c0_i32, %c0_i32_0 : i32, i32
  }
  func.func @transform_2(%arg0: i32) -> (i32, i32) {
    %c0_i32 = arith.constant 0 : i32
    %c0_i32_0 = arith.constant 0 : i32
    %c0_i32_1 = arith.constant 0 : i32
    return %c0_i32, %c0_i32_0 : i32, i32
  }
  func.func @transform_3(%arg0: i32) -> (i32, i32) {
    %c0_i32 = arith.constant 0 : i32
    %c0_i32_0 = arith.constant 0 : i32
    %c0_i32_1 = arith.constant 0 : i32
    return %c0_i32, %c0_i32_0 : i32, i32
  }
  func.func @transform_4(%arg0: i32) -> (i32, i32) {
    %c0_i32 = arith.constant 0 : i32
    %c0_i32_0 = arith.constant 0 : i32
    %c0_i32_1 = arith.constant 0 : i32
    return %c0_i32, %c0_i32_0 : i32, i32
  }
  func.func @transform_5(%arg0: i32) -> (i32, i32) {
    %c0_i32 = arith.constant 0 : i32
    %c0_i32_0 = arith.constant 0 : i32
    %c0_i32_1 = arith.constant 0 : i32
    return %c0_i32, %c0_i32_0 : i32, i32
  }
  func.func @transform_6(%arg0: i32) -> (i32, i32) {
    %c0_i32 = arith.constant 0 : i32
    %c0_i32_0 = arith.constant 0 : i32
    return %arg0, %c0_i32 : i32, i32
  }
}

</mosaic_0001>

<llo_original>
// kernel: tpu_custom_call.1
$region0: #{tpu_custom_call.1}
  #allocation0 [shape = 'u32[]', space=smem, size = 0x4, offset = 0x4, fixed_abs, tag = 'smem constant byte address 0x4 - core index']
  #allocation1 [shape = 'u32[144,128]{1,0:T(1,128)}', space=vmem, size = 0x12000, scoped, tag = 'internal scratch']
  %s0 = inlined_call_operand.hbm [shape: bf16[8,8,256], index: 0, kind: input, shape index: {}]
  %s1 = inlined_call_operand.hbm [shape: bf16[256,128], index: 1, kind: input, shape index: {}]
  %s2 = inlined_call_operand.vmem [shape: f32[1,128], index: 2, kind: input, shape index: {}]
  %s3 = inlined_call_operand.vmem [shape: f32[8,128], index: 3, kind: input, shape index: {}]
  %s4 = inlined_call_operand.hbm [shape: bf16[128,128], index: 4, kind: input, shape index: {}]
  %s5 = inlined_call_operand.vmem [shape: f32[1,128], index: 5, kind: input, shape index: {}]
  %s6 = inlined_call_operand.hbm [shape: f32[8,128], index: 6, kind: output, shape index: {}]
  %s7 = sld [smem:[#allocation0]]
  $region46: #{tpu_custom_call.1} parent=0
    _
  %s9 = ssub.s32 1, %s7
  %s10 = scalar_select 0, %s9, %s7
  $region1: #{tpu_custom_call.1} parent=0
    #allocation2 [shape = 'u8[32768]{0}', space=vmem, size = 0x8000, scoped, tag = 'input window, operand 0, single buffered']
    #allocation3 [shape = 's32[1]{0}', space=sflag, size = 0x4, scoped, tag = 'scoped memory for tpu_custom_call.1']
    #allocation4 [shape = 's32[1]{0}', space=sflag, size = 0x4, scoped, tag = 'scoped memory for tpu_custom_call.1']
    #allocation5 [shape = 'u8[65536]{0}', space=vmem, size = 0x10000, scoped, tag = 'input window, operand 1, single buffered']
    #allocation6 [shape = 's32[1]{0}', space=sflag, size = 0x4, scoped, tag = 'scoped memory for tpu_custom_call.1']
    #allocation7 [shape = 'u8[32768]{0}', space=vmem, size = 0x8000, scoped, tag = 'input window, operand 4, single buffered']
    #allocation8 [shape = 'u8[4096]{0}', space=vmem, size = 0x1000, scoped, tag = 'output window, operand 0, single buffered']
    %11 = vsyncpa [#allocation3], 0
    %12 = vsyncpa [#allocation6], 0
    %13 = vsyncpa [#allocation4], 0
    // Predicated region
    $region2: #{tpu_custom_call.1} parent=1 // pred_check
      _
    $region3: #{tpu_custom_call.1} parent=1 // pred_check_branch
      %15 = sbr.rel (0) target = $region5
    $region4: #{tpu_custom_call.1} parent=1 // pred_region
      %s17 = ssub.s32 1024, 1024
      %18 = vsyncadd [#allocation3], %s17
      %s19 = sshll.u32 [#allocation2], 4
      %s20 = int_to_ptr.vmem [resolvable:$true] %s19
      %25 = dma.hbm_to_vmem [thread:$0]  %s0, 1024, %s20, [#allocation3], 128, 128, 8
    $region5: #{tpu_custom_call.1} parent=1 // pred_fallthru
      _
    // Predicated region
    $region6: #{tpu_custom_call.1} parent=1 // pred_check
      _
    $region7: #{tpu_custom_call.1} parent=1 // pred_check_branch
      %27 = sbr.rel (0) target = $region9
    $region8: #{tpu_custom_call.1} parent=1 // pred_region
      %s29 = ssub.s32 2048, 2048
      %30 = vsyncadd [#allocation6], %s29
      %s31 = sshll.u32 [#allocation5], 4
      %s32 = int_to_ptr.vmem [resolvable:$true] %s31
      %37 = dma.hbm_to_vmem [thread:$0]  %s1, 2048, %s32, [#allocation6], 64, 64, 4
    $region9: #{tpu_custom_call.1} parent=1 // pred_fallthru
      _
    // Predicated region
    $region10: #{tpu_custom_call.1} parent=1 // pred_check
      _
    $region11: #{tpu_custom_call.1} parent=1 // pred_check_branch
      %39 = sbr.rel (0) target = $region13
    $region12: #{tpu_custom_call.1} parent=1 // pred_region
      _
    $region13: #{tpu_custom_call.1} parent=1 // pred_fallthru
      _
    // Predicated region
    $region14: #{tpu_custom_call.1} parent=1 // pred_check
      _
    $region15: #{tpu_custom_call.1} parent=1 // pred_check_branch
      %41 = sbr.rel (0) target = $region17
    $region16: #{tpu_custom_call.1} parent=1 // pred_region
      _
    $region17: #{tpu_custom_call.1} parent=1 // pred_fallthru
      _
    // Predicated region
    $region18: #{tpu_custom_call.1} parent=1 // pred_check
      _
    $region19: #{tpu_custom_call.1} parent=1 // pred_check_branch
      %43 = sbr.rel (0) target = $region21
    $region20: #{tpu_custom_call.1} parent=1 // pred_region
      %s45 = ssub.s32 1024, 1024
      %46 = vsyncadd [#allocation6], %s45
      %s47 = sshll.u32 [#allocation7], 4
      %s48 = int_to_ptr.vmem [resolvable:$true] %s47
      %53 = dma.hbm_to_vmem [thread:$0]  %s4, 1024, %s48, [#allocation6], 64, 64, 4
    $region21: #{tpu_custom_call.1} parent=1 // pred_fallthru
      _
    // Predicated region
    $region22: #{tpu_custom_call.1} parent=1 // pred_check
      _
    $region23: #{tpu_custom_call.1} parent=1 // pred_check_branch
      %55 = sbr.rel (0) target = $region25
    $region24: #{tpu_custom_call.1} parent=1 // pred_region
      _
    $region25: #{tpu_custom_call.1} parent=1 // pred_fallthru
      _
    // Predicated region
    $region26: #{tpu_custom_call.1} parent=1 // pred_check
      _
    $region27: #{tpu_custom_call.1} parent=1 // pred_check_branch
      %57 = sbr.rel (0) target = $region29
    $region28: #{tpu_custom_call.1} parent=1 // pred_region
      %58 = dma.done [#allocation3], 1024
    $region29: #{tpu_custom_call.1} parent=1 // pred_fallthru
      _
    // Predicated region
    $region30: #{tpu_custom_call.1} parent=1 // pred_check
      _
    $region31: #{tpu_custom_call.1} parent=1 // pred_check_branch
      %60 = sbr.rel (0) target = $region33
    $region32: #{tpu_custom_call.1} parent=1 // pred_region
      %61 = dma.done [#allocation6], 2048
    $region33: #{tpu_custom_call.1} parent=1 // pred_fallthru
      _
    // Predicated region
    $region34: #{tpu_custom_call.1} parent=1 // pred_check
      _
    $region35: #{tpu_custom_call.1} parent=1 // pred_check_branch
      %63 = sbr.rel (0) target = $region37
    $region36: #{tpu_custom_call.1} parent=1 // pred_region
      %64 = dma.done [#allocation6], 1024
    $region37: #{tpu_custom_call.1} parent=1 // pred_fallthru
      _
    %v66 = vld [vmem:[#allocation2] sm:$0xff]
    %v67 = vld [vmem:[#allocation2 + $0x8] sm:$0xff]
    %v68 = vld [vmem:[#allocation2 + $0x10] sm:$0xff]
    %v69 = vld [vmem:[#allocation2 + $0x18] sm:$0xff]
    %v70 = vld [vmem:[#allocation2 + $0x20] sm:$0xff]
    %v71 = vld [vmem:[#allocation2 + $0x28] sm:$0xff]
    %v72 = vld [vmem:[#allocation2 + $0x30] sm:$0xff]
    %v73 = vld [vmem:[#allocation2 + $0x38] sm:$0xff]
    %v74 = vld [vmem:[#allocation5] sm:$0xf]
    %v75 = vld [vmem:[#allocation5 + $0x4] sm:$0xf]
    %v76 = vld [vmem:[#allocation5 + $0x8] sm:$0xf]
    %v77 = vld [vmem:[#allocation5 + $0xc] sm:$0xf]
    %v78 = vld [vmem:[#allocation5 + $0x10] sm:$0xf]
    %v79 = vld [vmem:[#allocation5 + $0x14] sm:$0xf]
    %v80 = vld [vmem:[#allocation5 + $0x18] sm:$0xf]
    %v81 = vld [vmem:[#allocation5 + $0x1c] sm:$0xf]
    %v82 = vld [vmem:[#allocation5 + $0x20] sm:$0xf]
    %v83 = vld [vmem:[#allocation5 + $0x24] sm:$0xf]
    %v84 = vld [vmem:[#allocation5 + $0x28] sm:$0xf]
    %v85 = vld [vmem:[#allocation5 + $0x2c] sm:$0xf]
    %v86 = vld [vmem:[#allocation5 + $0x30] sm:$0xf]
    %v87 = vld [vmem:[#allocation5 + $0x34] sm:$0xf]
    %v88 = vld [vmem:[#allocation5 + $0x38] sm:$0xf]
    %v89 = vld [vmem:[#allocation5 + $0x3c] sm:$0xf]
    %v90 = vld [vmem:[#allocation5 + $0x40] sm:$0xf]
    %v91 = vld [vmem:[#allocation5 + $0x44] sm:$0xf]
    %v92 = vld [vmem:[#allocation5 + $0x48] sm:$0xf]
    %v93 = vld [vmem:[#allocation5 + $0x4c] sm:$0xf]
    %v94 = vld [vmem:[#allocation5 + $0x50] sm:$0xf]
    %v95 = vld [vmem:[#allocation5 + $0x54] sm:$0xf]
    %v96 = vld [vmem:[#allocation5 + $0x58] sm:$0xf]
    %v97 = vld [vmem:[#allocation5 + $0x5c] sm:$0xf]
    %v98 = vld [vmem:[#allocation5 + $0x60] sm:$0xf]
    %v99 = vld [vmem:[#allocation5 + $0x64] sm:$0xf]
    %v100 = vld [vmem:[#allocation5 + $0x68] sm:$0xf]
    %v101 = vld [vmem:[#allocation5 + $0x6c] sm:$0xf]
    %v102 = vld [vmem:[#allocation5 + $0x70] sm:$0xf]
    %v103 = vld [vmem:[#allocation5 + $0x74] sm:$0xf]
    %v104 = vld [vmem:[#allocation5 + $0x78] sm:$0xf]
    %v105 = vld [vmem:[#allocation5 + $0x7c] sm:$0xf]
    %v106 = vld [vmem:[%s2] sm:$0x1]
    %v108 = vlaneseq
    %v109 = vshrl.u32 %v108, 7
    %v110 = vsub.s32 0, %v109
    %v111 = vrot.slane %v106, %v110
    %v121 = vunpack.c.l.b16 %v66
    %v122 = vunpack.c.h.b16 %v66
    %v123 = vunpack.c.l.b16 %v67
    %v124 = vunpack.c.h.b16 %v67
    %v125 = vunpack.c.l.b16 %v68
    %v126 = vunpack.c.h.b16 %v68
    %v127 = vunpack.c.l.b16 %v69
    %v128 = vunpack.c.h.b16 %v69
    %v129 = vunpack.c.l.b16 %v70
    %v130 = vunpack.c.h.b16 %v70
    %v131 = vunpack.c.l.b16 %v71
    %v132 = vunpack.c.h.b16 %v71
    %v133 = vunpack.c.l.b16 %v72
    %v134 = vunpack.c.h.b16 %v72
    %v135 = vunpack.c.l.b16 %v73
    %v136 = vunpack.c.h.b16 %v73
    %v137 = vpack.c.b16 %v123, %v121
    %v138 = vpack.c.b16 %v124, %v122
    %v139 = vpack.c.b16 %v127, %v125
    %v140 = vpack.c.b16 %v128, %v126
    %v141 = vpack.c.b16 %v131, %v129
    %v142 = vpack.c.b16 %v132, %v130
    %v143 = vpack.c.b16 %v135, %v133
    %v144 = vpack.c.b16 %v136, %v134
    %v185 = vunpack.c.l.b16 %v74
    %v186 = vunpack.c.l.b16 %v75
    %v187 = vunpack.c.l.b16 %v76
    %v188 = vunpack.c.l.b16 %v77
    %v189 = vunpack.c.l.b16 %v78
    %v190 = vunpack.c.l.b16 %v79
    %v191 = vunpack.c.l.b16 %v80
    %v192 = vunpack.c.l.b16 %v81
    %v193 = vunpack.c.l.b16 %v82
    %v194 = vunpack.c.l.b16 %v83
    %v195 = vunpack.c.l.b16 %v84
    %v196 = vunpack.c.l.b16 %v85
    %v197 = vunpack.c.l.b16 %v86
    %v198 = vunpack.c.l.b16 %v87
    %v199 = vunpack.c.l.b16 %v88
    %v200 = vunpack.c.l.b16 %v89
    %v201 = vunpack.c.l.b16 %v90
    %v202 = vunpack.c.l.b16 %v91
    %v203 = vunpack.c.l.b16 %v92
    %v204 = vunpack.c.l.b16 %v93
    %v205 = vunpack.c.l.b16 %v94
    %v206 = vunpack.c.l.b16 %v95
    %v207 = vunpack.c.l.b16 %v96
    %v208 = vunpack.c.l.b16 %v97
    %v209 = vunpack.c.l.b16 %v98
    %v210 = vunpack.c.l.b16 %v99
    %v211 = vunpack.c.l.b16 %v100
    %v212 = vunpack.c.l.b16 %v101
    %v213 = vunpack.c.l.b16 %v102
    %v214 = vunpack.c.l.b16 %v103
    %v215 = vunpack.c.l.b16 %v104
    %v216 = vunpack.c.l.b16 %v105
    %v217 = vpack.c.b16 %v186, %v185
    %v218 = vpack.c.b16 %v188, %v187
    %v219 = vpack.c.b16 %v190, %v189
    %v220 = vpack.c.b16 %v192, %v191
    %v221 = vpack.c.b16 %v194, %v193
    %v222 = vpack.c.b16 %v196, %v195
    %v223 = vpack.c.b16 %v198, %v197
    %v224 = vpack.c.b16 %v200, %v199
    %v225 = vpack.c.b16 %v202, %v201
    %v226 = vpack.c.b16 %v204, %v203
    %v227 = vpack.c.b16 %v206, %v205
    %v228 = vpack.c.b16 %v208, %v207
    %v229 = vpack.c.b16 %v210, %v209
    %v230 = vpack.c.b16 %v212, %v211
    %v231 = vpack.c.b16 %v214, %v213
    %v232 = vpack.c.b16 %v216, %v215
    %249 = vmatprep.subr.bf16.mxu0 0
    %250 = vmatpush1.bf16.msra.mxu0 %v217
    %251 = vmatprep.subr.bf16.mxu0 0
    %252 = vmatpush1.bf16.msra.mxu0 %v218
    %253 = vmatprep.subr.bf16.mxu0 0
    %254 = vmatpush1.bf16.msra.mxu0 %v219
    %255 = vmatprep.subr.bf16.mxu0 0
    %256 = vmatpush1.bf16.msra.mxu0 %v220
    %257 = vmatprep.subr.bf16.mxu0 0
    %258 = vmatpush1.bf16.msra.mxu0 %v221
    %259 = vmatprep.subr.bf16.mxu0 0
    %260 = vmatpush1.bf16.msra.mxu0 %v222
    %261 = vmatprep.subr.bf16.mxu0 0
    %262 = vmatpush1.bf16.msra.mxu0 %v223
    %263 = vmatprep.subr.bf16.mxu0 0
    %264 = vmatpush1.bf16.msra.mxu0 %v224
    %265 = vmatprep.subr.bf16.mxu0 0
    %266 = vmatpush1.bf16.msra.mxu0 %v225
    %267 = vmatprep.subr.bf16.mxu0 0
    %268 = vmatpush1.bf16.msra.mxu0 %v226
    %269 = vmatprep.subr.bf16.mxu0 0
    %270 = vmatpush1.bf16.msra.mxu0 %v227
    %271 = vmatprep.subr.bf16.mxu0 0
    %272 = vmatpush1.bf16.msra.mxu0 %v228
    %273 = vmatprep.subr.bf16.mxu0 0
    %274 = vmatpush1.bf16.msra.mxu0 %v229
    %275 = vmatprep.subr.bf16.mxu0 0
    %276 = vmatpush1.bf16.msra.mxu0 %v230
    %277 = vmatprep.subr.bf16.mxu0 0
    %278 = vmatpush1.bf16.msra.mxu0 %v231
    %279 = vmatprep.subr.bf16.mxu0 0
    %280 = vmatpush1.bf16.msra.mxu0 %v232
    %281 = vmatprep.mubr.bf16.mxu0 %v138
    %282 = vmatmul.mubr.bf16.gmra.mrb[0].mxu0 %v137
    %v283 = vpop.f32.mrb[0].mxu0
    %v284 = vadd.f32 %v111, %v283
    %v285 = vpop.f32.mrb[0].mxu0
    %v286 = vpop.f32.mrb[0].mxu0
    %v287 = vadd.f32 %v111, %v286
    %v288 = vpop.f32.mrb[0].mxu0
    %289 = vmatprep.mubr.bf16.mxu0 %v140
    %290 = vmatmul.mubr.bf16.gmra.mrb[0].mxu0 %v139
    %v291 = vpop.f32.mrb[0].mxu0
    %v292 = vadd.f32 %v111, %v291
    %v293 = vpop.f32.mrb[0].mxu0
    %v294 = vpop.f32.mrb[0].mxu0
    %v295 = vadd.f32 %v111, %v294
    %v296 = vpop.f32.mrb[0].mxu0
    %297 = vmatprep.mubr.bf16.mxu0 %v142
    %298 = vmatmul.mubr.bf16.gmra.mrb[0].mxu0 %v141
    %v299 = vpop.f32.mrb[0].mxu0
    %v300 = vadd.f32 %v111, %v299
    %v301 = vpop.f32.mrb[0].mxu0
    %v302 = vpop.f32.mrb[0].mxu0
    %v303 = vadd.f32 %v111, %v302
    %v304 = vpop.f32.mrb[0].mxu0
    %305 = vmatprep.mubr.bf16.mxu0 %v144
    %306 = vmatmul.mubr.bf16.gmra.mrb[0].mxu0 %v143
    %v307 = vpop.f32.mrb[0].mxu0
    %v308 = vadd.f32 %v111, %v307
    %v309 = vpop.f32.mrb[0].mxu0
    %v310 = vpop.f32.mrb[0].mxu0
    %v311 = vadd.f32 %v111, %v310
    %v312 = vpop.f32.mrb[0].mxu0
    %313 = vdwg.mxu0
    %v314 = vmax.f32 %v284, 0.0
    %v315 = vmax.f32 %v287, 0.0
    %v316 = vmax.f32 %v292, 0.0
    %v317 = vmax.f32 %v295, 0.0
    %v318 = vmax.f32 %v300, 0.0
    %v319 = vmax.f32 %v303, 0.0
    %v320 = vmax.f32 %v308, 0.0
    %v321 = vmax.f32 %v311, 0.0
    %v322 = vld [vmem:[%s3] sm:$0xff]
    %v323 = vmul.f32 %v314, %v322
    %v324 = vmul.f32 %v315, %v322
    %v325 = vmul.f32 %v316, %v322
    %v326 = vmul.f32 %v317, %v322
    %v327 = vmul.f32 %v318, %v322
    %v328 = vmul.f32 %v319, %v322
    %v329 = vmul.f32 %v320, %v322
    %v330 = vmul.f32 %v321, %v322
    %v331 = vrot.slane %v323, 4
    %v332 = vmax.f32 %v323, %v331
    %v333 = vrot.slane %v332, 2
    %v334 = vmax.f32 %v332, %v333
    %v335 = vrot.slane %v334, 1
    %v336 = vmax.f32 %v334, %v335
    %v337 = vrot.slane %v324, 4
    %v338 = vmax.f32 %v324, %v337
    %v339 = vrot.slane %v338, 2
    %v340 = vmax.f32 %v338, %v339
    %v341 = vrot.slane %v340, 1
    %v342 = vmax.f32 %v340, %v341
    %v343 = vrot.slane %v325, 4
    %v344 = vmax.f32 %v325, %v343
    %v345 = vrot.slane %v344, 2
    %v346 = vmax.f32 %v344, %v345
    %v347 = vrot.slane %v346, 1
    %v348 = vmax.f32 %v346, %v347
    %v349 = vrot.slane %v326, 4
    %v350 = vmax.f32 %v326, %v349
    %v351 = vrot.slane %v350, 2
    %v352 = vmax.f32 %v350, %v351
    %v353 = vrot.slane %v352, 1
    %v354 = vmax.f32 %v352, %v353
    %v355 = vrot.slane %v327, 4
    %v356 = vmax.f32 %v327, %v355
    %v357 = vrot.slane %v356, 2
    %v358 = vmax.f32 %v356, %v357
    %v359 = vrot.slane %v358, 1
    %v360 = vmax.f32 %v358, %v359
    %v361 = vrot.slane %v328, 4
    %v362 = vmax.f32 %v328, %v361
    %v363 = vrot.slane %v362, 2
    %v364 = vmax.f32 %v362, %v363
    %v365 = vrot.slane %v364, 1
    %v366 = vmax.f32 %v364, %v365
    %v367 = vrot.slane %v329, 4
    %v368 = vmax.f32 %v329, %v367
    %v369 = vrot.slane %v368, 2
    %v370 = vmax.f32 %v368, %v369
    %v371 = vrot.slane %v370, 1
    %v372 = vmax.f32 %v370, %v371
    %v373 = vrot.slane %v330, 4
    %v374 = vmax.f32 %v330, %v373
    %v375 = vrot.slane %v374, 2
    %v376 = vmax.f32 %v374, %v375
    %v377 = vrot.slane %v376, 1
    %v378 = vmax.f32 %v376, %v377
    %v379 = vpack.c.bf16 %v336, %v336
    %v380 = vpack.c.bf16 %v342, %v342
    %v381 = vpack.c.bf16 %v348, %v348
    %v382 = vpack.c.bf16 %v354, %v354
    %v383 = vpack.c.bf16 %v360, %v360
    %v384 = vpack.c.bf16 %v366, %v366
    %v385 = vpack.c.bf16 %v372, %v372
    %v386 = vpack.c.bf16 %v378, %v378
    %v387 = vld [vmem:[#allocation7] sm:$0xf]
    %v388 = vld [vmem:[#allocation7 + $0x4] sm:$0xf]
    %v389 = vld [vmem:[#allocation7 + $0x8] sm:$0xf]
    %v390 = vld [vmem:[#allocation7 + $0xc] sm:$0xf]
    %v391 = vld [vmem:[#allocation7 + $0x10] sm:$0xf]
    %v392 = vld [vmem:[#allocation7 + $0x14] sm:$0xf]
    %v393 = vld [vmem:[#allocation7 + $0x18] sm:$0xf]
    %v394 = vld [vmem:[#allocation7 + $0x1c] sm:$0xf]
    %v395 = vld [vmem:[#allocation7 + $0x20] sm:$0xf]
    %v396 = vld [vmem:[#allocation7 + $0x24] sm:$0xf]
    %v397 = vld [vmem:[#allocation7 + $0x28] sm:$0xf]
    %v398 = vld [vmem:[#allocation7 + $0x2c] sm:$0xf]
    %v399 = vld [vmem:[#allocation7 + $0x30] sm:$0xf]
    %v400 = vld [vmem:[#allocation7 + $0x34] sm:$0xf]
    %v401 = vld [vmem:[#allocation7 + $0x38] sm:$0xf]
    %v402 = vld [vmem:[#allocation7 + $0x3c] sm:$0xf]
    %v403 = vld [vmem:[%s5] sm:$0x1]
    %v405 = vlaneseq
    %v406 = vshrl.u32 %v405, 7
    %v407 = vsub.s32 0, %v406
    %v408 = vrot.slane %v403, %v407
    %v418 = vunpack.c.l.b16 %v379
    %v419 = vunpack.c.l.b16 %v380
    %v420 = vunpack.c.l.b16 %v381
    %v421 = vunpack.c.l.b16 %v382
    %v422 = vunpack.c.l.b16 %v383
    %v423 = vunpack.c.l.b16 %v384
    %v424 = vunpack.c.l.b16 %v385
    %v425 = vunpack.c.l.b16 %v386
    %vm426 = vcmask 1041409
    %v427 = vsel %vm426, %v419, %v418
    %vm428 = vcmask 1042434
    %v429 = vsel %vm428, %v420, %v427
    %vm430 = vcmask 1043459
    %v431 = vsel %vm430, %v421, %v429
    %vm432 = vcmask 1044484
    %v433 = vsel %vm432, %v422, %v431
    %vm434 = vcmask 1045509
    %v435 = vsel %vm434, %v423, %v433
    %vm436 = vcmask 1046534
    %v437 = vsel %vm436, %v424, %v435
    %vm438 = vcmask 1047559
    %v439 = vsel %vm438, %v425, %v437
    %v440 = vpack.c.b16 %v439, %v439
    %v458 = vunpack.c.l.b16 %v387
    %v459 = vunpack.c.l.b16 %v388
    %v460 = vunpack.c.l.b16 %v389
    %v461 = vunpack.c.l.b16 %v390
    %v462 = vunpack.c.l.b16 %v391
    %v463 = vunpack.c.l.b16 %v392
    %v464 = vunpack.c.l.b16 %v393
    %v465 = vunpack.c.l.b16 %v394
    %v466 = vunpack.c.l.b16 %v395
    %v467 = vunpack.c.l.b16 %v396
    %v468 = vunpack.c.l.b16 %v397
    %v469 = vunpack.c.l.b16 %v398
    %v470 = vunpack.c.l.b16 %v399
    %v471 = vunpack.c.l.b16 %v400
    %v472 = vunpack.c.l.b16 %v401
    %v473 = vunpack.c.l.b16 %v402
    %v474 = vpack.c.b16 %v459, %v458
    %v475 = vpack.c.b16 %v461, %v460
    %v476 = vpack.c.b16 %v463, %v462
    %v477 = vpack.c.b16 %v465, %v464
    %v478 = vpack.c.b16 %v467, %v466
    %v479 = vpack.c.b16 %v469, %v468
    %v480 = vpack.c.b16 %v471, %v470
    %v481 = vpack.c.b16 %v473, %v472
    %490 = vmatprep.subr.bf16.mxu0 0
    %491 = vmatpush1.bf16.msra.mxu0 %v474
    %492 = vmatprep.subr.bf16.mxu0 0
    %493 = vmatpush1.bf16.msra.mxu0 %v475
    %494 = vmatprep.subr.bf16.mxu0 0
    %495 = vmatpush1.bf16.msra.mxu0 %v476
    %496 = vmatprep.subr.bf16.mxu0 0
    %497 = vmatpush1.bf16.msra.mxu0 %v477
    %498 = vmatprep.subr.bf16.mxu0 0
    %499 = vmatpush1.bf16.msra.mxu0 %v478
    %500 = vmatprep.subr.bf16.mxu0 0
    %501 = vmatpush1.bf16.msra.mxu0 %v479
    %502 = vmatprep.subr.bf16.mxu0 0
    %503 = vmatpush1.bf16.msra.mxu0 %v480
    %504 = vmatprep.subr.bf16.mxu0 0
    %505 = vmatpush1.bf16.msra.mxu0 %v481
    %506 = vmatprep.subr.bf16.mxu0 0
    %507 = vmatpush1.bf16.msra.mxu0 0
    %508 = vmatprep.subr.bf16.mxu0 0
    %509 = vmatpush1.bf16.msra.mxu0 0
    %510 = vmatprep.subr.bf16.mxu0 0
    %511 = vmatpush1.bf16.msra.mxu0 0
    %512 = vmatprep.subr.bf16.mxu0 0
    %513 = vmatpush1.bf16.msra.mxu0 0
    %514 = vmatprep.subr.bf16.mxu0 0
    %515 = vmatpush1.bf16.msra.mxu0 0
    %516 = vmatprep.subr.bf16.mxu0 0
    %517 = vmatpush1.bf16.msra.mxu0 0
    %518 = vmatprep.subr.bf16.mxu0 0
    %519 = vmatpush1.bf16.msra.mxu0 0
    %520 = vmatprep.subr.bf16.mxu0 0
    %521 = vmatpush1.bf16.msra.mxu0 0
    %522 = vmatprep.mubr.bf16.mxu0 0
    %523 = vmatmul.mubr.bf16.gmra.mrb[0].mxu0 %v440
    %v524 = vpop.f32.mrb[0].mxu0
    %v525 = vadd.f32 %v408, %v524
    %v526 = vpop.f32.mrb[0].mxu0
    %v527 = vpop.f32.mrb[0].mxu0
    %v528 = vpop.f32.mrb[0].mxu0
    %529 = vdwg.mxu0
    %530 = vst [vmem:[#allocation8] sm:$0xff] %v525
    // Predicated region
    $region38: #{tpu_custom_call.1} parent=1 // pred_check
      _
    $region39: #{tpu_custom_call.1} parent=1 // pred_check_branch
      %532 = sbr.rel (0) target = $region41
    $region40: #{tpu_custom_call.1} parent=1 // pred_region
      %s534 = ssub.s32 128, 128
      %535 = vsyncadd [#allocation4], %s534
      %s537 = sshll.u32 [#allocation8], 4
      %s538 = int_to_ptr.vmem [resolvable:$true] %s537
      %540 = dma.vmem_to_hbm [thread:$0]  %s538, 128, %s6, [#allocation4]
    $region41: #{tpu_custom_call.1} parent=1 // pred_fallthru
      _
    // Predicated region
    $region42: #{tpu_custom_call.1} parent=1 // pred_check
      _
    $region43: #{tpu_custom_call.1} parent=1 // pred_check_branch
      %542 = sbr.rel (0) target = $region45
    $region44: #{tpu_custom_call.1} parent=1 // pred_region
      %543 = dma.done [#allocation4], 128
    $region45: #{tpu_custom_call.1} parent=1 // pred_fallthru
      _
    %544 = vsyncpa [#allocation3], 1
    %545 = vsyncpa [#allocation6], 1
    %546 = vsyncpa [#allocation4], 1

</llo_original>
